<compile_context>
chip_gen: v7x
topology: tpu7x:2x2x1
jax: 0.10.0
libtpu: 0.0.40
codegen_flags: <defaults>
</compile_context>

<pallas_src>
import jax
import jax.numpy as jnp
from jax.experimental import pallas as pl
from jax.experimental.pallas import tpu as pltpu


def _whiten_kernel(x_ref, scale_ref, bias_ref, o_ref):
    # x_ref / o_ref:        (row_tile, lane_tile) VMEM tiles.
    # scale_ref / bias_ref: (row_tile, 1) per-row f32 constants (sublane
    #                       broadcast), read once into locals (hoisted).
    s = scale_ref[...]
    b = bias_ref[...]
    x = x_ref[...].astype(jnp.float32)
    o_ref[...] = (x * s + b).astype(o_ref.dtype)


def _choose_tiles(R, L, in_bytes, out_bytes, target_block_bytes):
    """Pick (TR, TL): short-row, wide-lane tiles under a per-block byte budget."""
    bpe = max(in_bytes, out_bytes)                      # bytes governing VMEM footprint
    pack = max(8, 32 // min(in_bytes, out_bytes))       # sublane packing of narrower dtype

    # Lane tile: full rows whenever one pack-row band fits the budget
    # (contiguous DMA, no masked edge columns).
    if L * pack * bpe <= target_block_bytes or L <= 128:
        TL = L
    else:
        cap = max(128, (target_block_bytes // (pack * bpe)) // 128 * 128)
        TL = 0
        # Prefer a multiple of 128 that evenly divides L (no masked edge block).
        for m in range(cap // 128, 0, -1):
            t = m * 128
            if L % t == 0:
                TL = t
                break
        if TL == 0:
            TL = cap  # unavoidable masked edge; keep DMAs as large as possible.

    # Row tile: fill the block budget with a multiple of `pack`.
    if R <= pack:
        TR = R  # full-extent block along rows (legal regardless of pack).
    else:
        rows = max(pack, (target_block_bytes // (TL * bpe)) // pack * pack)
        TR = min(rows, R)

    # v7x has 2 TensorCores: guarantee >=2 blocks along a parallel axis when
    # the data is big enough to split.
    if pl.cdiv(R, TR) == 1 and pl.cdiv(L, TL) == 1 and R >= 2 * pack:
        TR = max(pack, ((R // 2) // pack) * pack)

    return TR, TL


def data_whiten(x, data_mean, data_std, *,
                target_block_bytes=2 << 20,
                small_input_bytes=1 << 16,
                force_pallas=False):
    """Pallas equivalent of data_whiten_layer.forward: (x - mean) / std.

    Args:
      x:         (N, C, H, W) array (NCHW, like PyTorch).
      data_mean: per-channel mean, reshapeable to (C,).
      data_std:  per-channel std, reshapeable to (C,).
      target_block_bytes: per-block VMEM budget (input and output each).
      small_input_bytes:  below this total size, fall back to plain jnp
                          (pallas_call launch overhead dominates).
      force_pallas: always take the Pallas path (used by tests).
    Returns:
      (N, C, H, W) array of (x - mean) / std.  Floating inputs keep their
      dtype; integer/bool inputs are promoted to float32 (PyTorch semantics).
    """
    N, C, H, W = x.shape
    R = N * C
    L = H * W

    if jnp.issubdtype(x.dtype, jnp.floating):
        out_dtype = x.dtype
    else:
        out_dtype = jnp.float32  # match PyTorch promotion for int/uint/bool inputs

    mean = jnp.asarray(data_mean, dtype=jnp.float32).reshape(C)
    std = jnp.asarray(data_std, dtype=jnp.float32).reshape(C)

    # Small-input fallback: XLA's fused broadcasted FMA beats a kernel launch.
    total_bytes = R * L * jnp.dtype(x.dtype).itemsize
    if not force_pallas and total_bytes < small_input_bytes:
        xf = x.astype(jnp.float32)
        out = (xf - mean.reshape(1, C, 1, 1)) / std.reshape(1, C, 1, 1)
        return out.astype(out_dtype)

    # Exact (non-approx) host-side reciprocal keeps results within normal f32
    # tolerance of the PyTorch (x - mean) / std formulation.
    scale_c = 1.0 / std
    bias_c = -mean / std

    # Per-row (per (n, c) pair) constants, shape (R, 1): row r = n*C + c.
    scale = jnp.tile(scale_c, N).reshape(R, 1)
    bias = jnp.tile(bias_c, N).reshape(R, 1)

    x2 = x.reshape(R, L)

    in_bytes = jnp.dtype(x.dtype).itemsize
    out_bytes = jnp.dtype(out_dtype).itemsize
    TR, TL = _choose_tiles(R, L, in_bytes, out_bytes, target_block_bytes)

    grid = (pl.cdiv(R, TR), pl.cdiv(L, TL))

    cost = pl.CostEstimate(
        flops=2 * R * L,
        transcendentals=0,
        bytes_accessed=R * L * (in_bytes + out_bytes) + 2 * R * 4,
    )

    out2 = pl.pallas_call(
        _whiten_kernel,
        out_shape=jax.ShapeDtypeStruct((R, L), out_dtype),
        grid=grid,
        in_specs=[
            pl.BlockSpec((TR, TL), lambda i, j: (i, j)),
            pl.BlockSpec((TR, 1), lambda i, j: (i, 0)),
            pl.BlockSpec((TR, 1), lambda i, j: (i, 0)),
        ],
        out_specs=pl.BlockSpec((TR, TL), lambda i, j: (i, j)),
        compiler_params=pltpu.CompilerParams(
            dimension_semantics=("parallel", "parallel"),
        ),
        cost_estimate=cost,
    )(x2, scale, bias)

    return out2.reshape(N, C, H, W)


if __name__ == "__main__":
    key = jax.random.PRNGKey(0)

    # Module __init__ implies 3 channels (reshape(3, 1, 1)).
    C = 3
    data_mean = jnp.array([0.485, 0.456, 0.406], dtype=jnp.float32)
    data_std = jnp.array([0.229, 0.224, 0.225], dtype=jnp.float32)

    def ref_whiten(x):
        xf = x.astype(jnp.float32)
        r = (xf - data_mean.reshape(1, C, 1, 1)) / data_std.reshape(1, C, 1, 1)
        return r.astype(x.dtype if jnp.issubdtype(x.dtype, jnp.floating)
                        else jnp.float32)

    # 1) Small demo shape: force the Pallas path so the kernel actually runs.
    x = jax.random.normal(key, (2, C, 16, 16), dtype=jnp.float32)
    out = jax.block_until_ready(data_whiten(x, data_mean, data_std,
                                            force_pallas=True))
    assert out.shape == x.shape and out.dtype == x.dtype
    assert jnp.allclose(out, ref_whiten(x), rtol=1e-5, atol=1e-5)

    # 2) Odd spatial size (non-128-multiple row length): TL = L full-row path.
    x_odd = jax.random.normal(jax.random.PRNGKey(1), (2, C, 48, 50), jnp.float32)
    out_odd = jax.block_until_ready(data_whiten(x_odd, data_mean, data_std,
                                                force_pallas=True))
    assert jnp.allclose(out_odd, ref_whiten(x_odd), rtol=1e-5, atol=1e-5)

    # 3) Larger shape exercising the multi-row-block grid (>=2 parallel blocks).
    x_big = jax.random.normal(jax.random.PRNGKey(2), (8, C, 64, 64), jnp.float32)
    out_big = jax.block_until_ready(data_whiten(x_big, data_mean, data_std,
                                                force_pallas=True))
    assert jnp.allclose(out_big, ref_whiten(x_big), rtol=1e-5, atol=1e-5)

    # 4) bf16 input keeps bf16 output (row pack handled via 16-row tiles).
    x_bf16 = x_big.astype(jnp.bfloat16)
    out_bf16 = jax.block_until_ready(data_whiten(x_bf16, data_mean, data_std,
                                                 force_pallas=True))
    assert out_bf16.dtype == jnp.bfloat16
    assert jnp.allclose(out_bf16.astype(jnp.float32),
                        ref_whiten(x_bf16).astype(jnp.float32),
                        rtol=2e-2, atol=2e-2)

    # 5) uint8 "image" input promotes to float32 output (PyTorch semantics).
    x_u8 = jax.random.randint(jax.random.PRNGKey(3), (2, C, 32, 32), 0, 256,
                              dtype=jnp.uint8)
    out_u8 = jax.block_until_ready(data_whiten(x_u8, data_mean, data_std,
                                               force_pallas=True))
    assert out_u8.dtype == jnp.float32
    assert jnp.allclose(out_u8, ref_whiten(x_u8), rtol=1e-4, atol=1e-4)

    # 6) Tiny-input jnp fallback path still matches.
    out_small = jax.block_until_ready(data_whiten(x, data_mean, data_std))
    assert jnp.allclose(out_small, ref_whiten(x), rtol=1e-5, atol=1e-5)

    print("KERNEL_OK")
</pallas_src>

<mosaic_0001>
module attributes {stable_mosaic.version = 11 : i64} {
  func.func @_whiten_kernel(%arg0: i32, %arg1: i32, %arg2: memref<6x256xf32, #tpu.memory_space<vmem>>, %arg3: memref<6x1xf32, #tpu.memory_space<vmem>>, %arg4: memref<6x1xf32, #tpu.memory_space<vmem>>, %arg5: memref<6x256xf32, #tpu.memory_space<vmem>>) attributes {dimension_semantics = [#tpu.dimension_semantics<parallel>, #tpu.dimension_semantics<parallel>], iteration_bounds = array<i64: 1, 1>, scalar_prefetch = 0 : i64, scratch_operands = 0 : i64, tpu.core_type = #tpu.core_type<tc>, window_params = [{transform_indices = @transform_0, window_bounds = array<i64: 6, 256>}, {transform_indices = @transform_1, window_bounds = array<i64: 6, 1>}, {transform_indices = @transform_2, window_bounds = array<i64: 6, 1>}, {transform_indices = @transform_3, window_bounds = array<i64: 6, 256>}]} {
    %c0 = arith.constant 0 : index
    %c0_0 = arith.constant 0 : index
    %0 = vector.load %arg3[%c0, %c0_0] : memref<6x1xf32, #tpu.memory_space<vmem>>, vector<6x1xf32>
    %c0_1 = arith.constant 0 : index
    %c0_2 = arith.constant 0 : index
    %1 = vector.load %arg4[%c0_1, %c0_2] : memref<6x1xf32, #tpu.memory_space<vmem>>, vector<6x1xf32>
    %c0_3 = arith.constant 0 : index
    %c0_4 = arith.constant 0 : index
    %2 = vector.load %arg2[%c0_3, %c0_4] : memref<6x256xf32, #tpu.memory_space<vmem>>, vector<6x256xf32>
    %3 = vector.broadcast %0 : vector<6x1xf32> to vector<6x256xf32>
    %4 = arith.mulf %2, %3 : vector<6x256xf32>
    %5 = vector.broadcast %1 : vector<6x1xf32> to vector<6x256xf32>
    %6 = arith.addf %4, %5 : vector<6x256xf32>
    %c0_5 = arith.constant 0 : index
    %c0_6 = arith.constant 0 : index
    %7 = vector.load %arg5[%c0_5, %c0_6] : memref<6x256xf32, #tpu.memory_space<vmem>>, vector<6x256xf32>
    tpu.vector_store %arg5[%c0_5, %c0_6], %6 {strides = array<i32>} : memref<6x256xf32, #tpu.memory_space<vmem>>, vector<6x256xf32>,
    return
  }
  func.func @transform_0(%arg0: i32, %arg1: i32) -> (i32, i32) {
    %c0_i32 = arith.constant 0 : i32
    return %arg0, %arg1 : i32, i32
  }
  func.func @transform_1(%arg0: i32, %arg1: i32) -> (i32, i32) {
    %c0_i32 = arith.constant 0 : i32
    %c0_i32_0 = arith.constant 0 : i32
    return %arg0, %c0_i32 : i32, i32
  }
  func.func @transform_2(%arg0: i32, %arg1: i32) -> (i32, i32) {
    %c0_i32 = arith.constant 0 : i32
    %c0_i32_0 = arith.constant 0 : i32
    return %arg0, %c0_i32 : i32, i32
  }
  func.func @transform_3(%arg0: i32, %arg1: i32) -> (i32, i32) {
    %c0_i32 = arith.constant 0 : i32
    return %arg0, %arg1 : i32, i32
  }
}

</mosaic_0001>

<llo_original>
// kernel: tpu_custom_call.1
$region0: #{tpu_custom_call.1}
  #allocation0 [shape = 'u32[]', space=smem, size = 0x4, offset = 0x4, fixed_abs, tag = 'smem constant byte address 0x4 - core index']
  #allocation1 [shape = 'u32[144,128]{1,0:T(1,128)}', space=vmem, size = 0x12000, scoped, tag = 'internal scratch']
  %s0 = inlined_call_operand.vmem [shape: f32[6,256], index: 0, kind: input, shape index: {}]
  %s1 = inlined_call_operand.vmem [shape: f32[6,1], index: 1, kind: input, shape index: {}]
  %s2 = inlined_call_operand.vmem [shape: f32[6,1], index: 2, kind: input, shape index: {}]
  %s3 = inlined_call_operand.hbm [shape: f32[6,256], index: 3, kind: output, shape index: {}]
  %s4 = sld [smem:[#allocation0]]
  $region22: #{tpu_custom_call.1} parent=0
    _
  %s6 = ssub.s32 1, %s4
  %s7 = scalar_select 0, %s6, %s4
  $region1: #{tpu_custom_call.1} parent=0
    #allocation2 [shape = 'u8[8192]{0}', space=vmem, size = 0x2000, scoped, tag = 'output window, operand 0, single buffered']
    #allocation3 [shape = 's32[1]{0}', space=sflag, size = 0x4, scoped, tag = 'scoped memory for tpu_custom_call.1']
    %8 = vsyncpa [#allocation3], 0
    // Predicated region
    $region2: #{tpu_custom_call.1} parent=1 // pred_check
      _
    $region3: #{tpu_custom_call.1} parent=1 // pred_check_branch
      %10 = sbr.rel (0) target = $region5
    $region4: #{tpu_custom_call.1} parent=1 // pred_region
      _
    $region5: #{tpu_custom_call.1} parent=1 // pred_fallthru
      _
    // Predicated region
    $region6: #{tpu_custom_call.1} parent=1 // pred_check
      _
    $region7: #{tpu_custom_call.1} parent=1 // pred_check_branch
      %12 = sbr.rel (0) target = $region9
    $region8: #{tpu_custom_call.1} parent=1 // pred_region
      _
    $region9: #{tpu_custom_call.1} parent=1 // pred_fallthru
      _
    // Predicated region
    $region10: #{tpu_custom_call.1} parent=1 // pred_check
      _
    $region11: #{tpu_custom_call.1} parent=1 // pred_check_branch
      %14 = sbr.rel (0) target = $region13
    $region12: #{tpu_custom_call.1} parent=1 // pred_region
      _
    $region13: #{tpu_custom_call.1} parent=1 // pred_fallthru
      _
    %v15 = vld [vmem:[%s1] sm:$0x3f]
    %v16 = vld [vmem:[%s2] sm:$0x3f]
    %v17 = vld [vmem:[%s0] sm:$0x3f]
    %v18 = vld [vmem:[%s0 + $0x8] sm:$0x3f]
    %20 = vset.pattern.permute.xlu0 0
    %21 = vperm.xlu0 %20, %v15
    %v22 = vpop.permute.xlu0 %21
    %v24 = vmul.f32 %v17, %v22
    %v25 = vmul.f32 %v18, %v22
    %27 = vset.pattern.permute.xlu0 0
    %28 = vperm.xlu0 %27, %v16
    %v29 = vpop.permute.xlu0 %28
    %v31 = vadd.f32 %v24, %v29
    %v32 = vadd.f32 %v25, %v29
    %33 = vst [vmem:[#allocation2] sm:$0x3f] %v31
    %34 = vst [vmem:[#allocation2 + $0x8] sm:$0x3f] %v32
    // Predicated region
    $region14: #{tpu_custom_call.1} parent=1 // pred_check
      _
    $region15: #{tpu_custom_call.1} parent=1 // pred_check_branch
      %36 = sbr.rel (0) target = $region17
    $region16: #{tpu_custom_call.1} parent=1 // pred_region
      %s38 = ssub.s32 256, 256
      %39 = vsyncadd [#allocation3], %s38
      %s41 = sshll.u32 [#allocation2], 4
      %s42 = int_to_ptr.vmem [resolvable:$true] %s41
      %44 = dma.vmem_to_hbm [thread:$0]  %s42, 256, %s3, [#allocation3]
    $region17: #{tpu_custom_call.1} parent=1 // pred_fallthru
      _
    // Predicated region
    $region18: #{tpu_custom_call.1} parent=1 // pred_check
      _
    $region19: #{tpu_custom_call.1} parent=1 // pred_check_branch
      %46 = sbr.rel (0) target = $region21
    $region20: #{tpu_custom_call.1} parent=1 // pred_region
      %47 = dma.done [#allocation3], 256
    $region21: #{tpu_custom_call.1} parent=1 // pred_fallthru
      _
    %48 = vsyncpa [#allocation3], 1

</llo_original>
